<compile_context>
chip_gen: v6e
topology: v6e:2x2x1
jax: 0.10.0
libtpu: 0.0.40
codegen_flags: <defaults>
</compile_context>

<pallas_src>
import functools

import jax
import jax.numpy as jnp
from jax.experimental import pallas as pl
from jax.experimental.pallas import tpu as pltpu

_LANE = 128
_SUBLANE = 8
_MAX_TILE_ROWS = 1024          # (1024,128) f32 tile = 512 KiB / input / buffer
_MIN_TILES_FOR_SPLIT = 8       # only split across cores when it is ~free


def _round_up(x, m):
    return (x + m - 1) // m * m


def _bce_partial_sum_kernel(x_ref, t_ref, o_ref, *, tile_rows, rows,
                            tiles_per_chunk, need_mask):
    """Accumulate the sum of per-element BCE into an (8,128) slab per chunk."""
    c = pl.program_id(0)           # "parallel" chunk axis (megacore on v7x)
    t = pl.program_id(1)           # "arbitrary" reduction axis

    @pl.when(t == 0)
    def _():
        o_ref[...] = jnp.zeros_like(o_ref)

    x = x_ref[...].astype(jnp.float32)
    tgt = t_ref[...].astype(jnp.float32)

    # Matches torch.nn.functional.binary_cross_entropy (log clamped at -100).
    log_x = jnp.maximum(jnp.log(x), -100.0)
    log_1mx = jnp.maximum(jnp.log(1.0 - x), -100.0)
    bce = -(tgt * log_x + (1.0 - tgt) * log_1mx)

    if need_mask:
        # Zero rows past the real array (ragged last tile / clamped
        # fully-out-of-range tiles of the last chunk). jnp.where selects, so
        # any garbage/NaN in the out-of-bounds region cannot leak through.
        tile_idx = c * tiles_per_chunk + t
        row_in_tile = jax.lax.broadcasted_iota(jnp.int32, (tile_rows, _LANE), 0)
        global_row = tile_idx * tile_rows + row_in_tile
        bce = jnp.where(global_row < rows, bce, 0.0)

    # Fold the (tile_rows, 128) tile onto (8, 128) with pure VPU adds; the
    # single cross-lane/sublane (XLU) reduce happens once, outside the loop.
    tile_partial = bce.reshape(tile_rows // _SUBLANE, _SUBLANE, _LANE).sum(axis=0)
    o_ref[0, :, :] = o_ref[0, :, :] + tile_partial


def focal_loss(inputs, targets, *, alpha=0.8, gamma=2.0):
    """Binary focal loss, semantics of FocalLoss(binary=True).forward."""
    assert inputs.shape == targets.shape
    n = inputs.size

    flat_x = inputs.reshape(-1)
    flat_t = targets.reshape(-1)

    # Tail-pad (< 128 elements) with (x=1, t=1): that BCE term is exactly 0,
    # so no mask array and no full-size padded copies are needed.
    pad = (-n) % _LANE
    if pad:
        flat_x = jnp.concatenate([flat_x, jnp.ones((pad,), flat_x.dtype)])
        flat_t = jnp.concatenate([flat_t, jnp.ones((pad,), flat_t.dtype)])

    rows = flat_x.shape[0] // _LANE
    x2d = flat_x.reshape(rows, _LANE)
    t2d = flat_t.reshape(rows, _LANE)

    tile_rows = min(_MAX_TILE_ROWS, _round_up(rows, _SUBLANE))
    tiles_total = pl.cdiv(rows, tile_rows)
    nchunks = 2 if tiles_total >= _MIN_TILES_FOR_SPLIT else 1
    tiles_per_chunk = pl.cdiv(tiles_total, nchunks)
    need_mask = (nchunks * tiles_per_chunk * tile_rows != rows)

    def in_map(c, t):
        # Clamp so a fully-out-of-range tile of a ragged split re-reads a
        # valid tile; its contribution is masked to zero inside the kernel.
        return (jnp.minimum(c * tiles_per_chunk + t, tiles_total - 1), 0)

    kernel = functools.partial(
        _bce_partial_sum_kernel,
        tile_rows=tile_rows, rows=rows,
        tiles_per_chunk=tiles_per_chunk, need_mask=need_mask)

    partials = pl.pallas_call(
        kernel,
        out_shape=jax.ShapeDtypeStruct((nchunks, _SUBLANE, _LANE), jnp.float32),
        grid=(nchunks, tiles_per_chunk),
        in_specs=[
            pl.BlockSpec((tile_rows, _LANE), in_map),
            pl.BlockSpec((tile_rows, _LANE), in_map),
        ],
        out_specs=pl.BlockSpec((1, _SUBLANE, _LANE), lambda c, t: (c, 0, 0)),
        compiler_params=pltpu.CompilerParams(
            dimension_semantics=("parallel", "arbitrary")),
        cost_estimate=pl.CostEstimate(
            flops=7 * n,
            transcendentals=2 * n,
            bytes_accessed=(flat_x.dtype.itemsize + flat_t.dtype.itemsize) * n
                           + nchunks * _SUBLANE * _LANE * 4),
    )(x2d, t2d)

    # Tiny scalar epilogue: one cross-lane reduce + a handful of flops.
    ce = jnp.sum(partials) / jnp.float32(n)
    ce_exp = jnp.exp(-ce)
    one_minus = 1.0 - ce_exp
    if float(gamma) == 2.0:
        pow_term = one_minus * one_minus     # avoid pow -> exp(g*log(x)), log(0) hazard
    else:
        pow_term = one_minus ** jnp.float32(gamma)
    return jnp.float32(alpha) * pow_term * ce


def _focal_loss_ref(inputs, targets, alpha=0.8, gamma=2.0):
    x = inputs.astype(jnp.float32)
    t = targets.astype(jnp.float32)
    bce = -(t * jnp.maximum(jnp.log(x), -100.0)
            + (1.0 - t) * jnp.maximum(jnp.log(1.0 - x), -100.0))
    ce = jnp.mean(bce)
    ce_exp = jnp.exp(-ce)
    return alpha * (1.0 - ce_exp) ** gamma * ce


def _check(shape, key):
    kx, kt = jax.random.split(key)
    inputs = jax.random.uniform(kx, shape, jnp.float32, minval=0.01, maxval=0.99)
    targets = jax.random.bernoulli(kt, 0.5, shape).astype(jnp.float32)
    out = jax.block_until_ready(focal_loss(inputs, targets, alpha=0.8, gamma=2.0))
    ref = _focal_loss_ref(inputs, targets, alpha=0.8, gamma=2.0)
    assert jnp.allclose(out, ref, rtol=1e-5, atol=1e-6), (shape, out, ref)


if __name__ == "__main__":
    key = jax.random.PRNGKey(0)
    k0, k1, k2 = jax.random.split(key, 3)

    # Primary small NCHW case matching the PyTorch convention.
    _check((2, 4, 16, 16), k0)
    # Non-multiple-of-128 case: exercises tail pad + in-kernel ragged-row mask.
    _check((2, 3, 37, 29), k1)
    # Multi-tile case: exercises the streaming grid accumulation.
    _check((4, 16, 64, 64), k2)

    print("KERNEL_OK")
</pallas_src>

<mosaic_0001>
module attributes {stable_mosaic.version = 11 : i64} {
  func.func @_bce_partial_sum_kernel(%arg0: i32, %arg1: i32, %arg2: memref<16x128xf32, #tpu.memory_space<vmem>>, %arg3: memref<16x128xf32, #tpu.memory_space<vmem>>, %arg4: memref<1x8x128xf32, #tpu.memory_space<vmem>>) attributes {dimension_semantics = [#tpu.dimension_semantics<parallel>, #tpu.dimension_semantics<arbitrary>], iteration_bounds = array<i64: 1, 1>, scalar_prefetch = 0 : i64, scratch_operands = 0 : i64, tpu.core_type = #tpu.core_type<tc>, window_params = [{transform_indices = @transform_0, window_bounds = array<i64: 16, 128>}, {transform_indices = @transform_1, window_bounds = array<i64: 16, 128>}, {transform_indices = @transform_2, window_bounds = array<i64: 1, 8, 128>}]} {
    %c0_i32 = arith.constant 0 : i32
    %0 = arith.cmpi eq, %arg1, %c0_i32 : i32
    %1 = arith.extui %0 : i1 to i32
    %c0_i32_0 = arith.constant 0 : i32
    %2 = arith.cmpi ne, %1, %c0_i32_0 : i32
    scf.if %2 {
      %cst_15 = arith.constant 0.000000e+00 : f32
      %28 = vector.broadcast %cst_15 : f32 to vector<1x8x128xf32>
      %c0_16 = arith.constant 0 : index
      %c0_17 = arith.constant 0 : index
      %c0_18 = arith.constant 0 : index
      %29 = vector.load %arg4[%c0_16, %c0_17, %c0_18] : memref<1x8x128xf32, #tpu.memory_space<vmem>>, vector<1x8x128xf32>
      tpu.vector_store %arg4[%c0_16, %c0_17, %c0_18], %28 {strides = array<i32>} : memref<1x8x128xf32, #tpu.memory_space<vmem>>, vector<1x8x128xf32>,
    } else {
    }
    %c0 = arith.constant 0 : index
    %c0_1 = arith.constant 0 : index
    %3 = vector.load %arg2[%c0, %c0_1] : memref<16x128xf32, #tpu.memory_space<vmem>>, vector<16x128xf32>
    %c0_2 = arith.constant 0 : index
    %c0_3 = arith.constant 0 : index
    %4 = vector.load %arg3[%c0_2, %c0_3] : memref<16x128xf32, #tpu.memory_space<vmem>>, vector<16x128xf32>
    %5 = math.log %3 : vector<16x128xf32>
    %cst = arith.constant -1.000000e+02 : f32
    %6 = vector.broadcast %cst : f32 to vector<16x128xf32>
    %7 = arith.maximumf %5, %6 : vector<16x128xf32>
    %cst_4 = arith.constant 1.000000e+00 : f32
    %8 = vector.broadcast %cst_4 : f32 to vector<16x128xf32>
    %9 = arith.subf %8, %3 : vector<16x128xf32>
    %10 = math.log %9 : vector<16x128xf32>
    %cst_5 = arith.constant -1.000000e+02 : f32
    %11 = vector.broadcast %cst_5 : f32 to vector<16x128xf32>
    %12 = arith.maximumf %10, %11 : vector<16x128xf32>
    %13 = arith.mulf %4, %7 : vector<16x128xf32>
    %cst_6 = arith.constant 1.000000e+00 : f32
    %14 = vector.broadcast %cst_6 : f32 to vector<16x128xf32>
    %15 = arith.subf %14, %4 : vector<16x128xf32>
    %16 = arith.mulf %15, %12 : vector<16x128xf32>
    %17 = arith.addf %13, %16 : vector<16x128xf32>
    %cst_7 = arith.constant 0.000000e+00 : f32
    %18 = vector.broadcast %cst_7 : f32 to vector<16x128xf32>
    %19 = arith.subf %18, %17 : vector<16x128xf32>
    %20 = vector.shape_cast %19 : vector<16x128xf32> to vector<2x8x128xf32>
    %cst_8 = arith.constant dense<0.000000e+00> : vector<8x128xf32>
    %21 = vector.multi_reduction <add>, %20, %cst_8 [0] : vector<2x8x128xf32> to vector<8x128xf32>
    %c0_9 = arith.constant 0 : index
    %c0_10 = arith.constant 0 : index
    %c0_11 = arith.constant 0 : index
    %22 = vector.load %arg4[%c0_9, %c0_10, %c0_11] : memref<1x8x128xf32, #tpu.memory_space<vmem>>, vector<1x8x128xf32>
    %23 = vector.shape_cast %22 : vector<1x8x128xf32> to vector<8x128xf32>
    %24 = arith.addf %23, %21 : vector<8x128xf32>
    %c0_12 = arith.constant 0 : index
    %c0_13 = arith.constant 0 : index
    %c0_14 = arith.constant 0 : index
    %25 = vector.load %arg4[%c0_12, %c0_13, %c0_14] : memref<1x8x128xf32, #tpu.memory_space<vmem>>, vector<1x8x128xf32>
    %26 = vector.shape_cast %25 : vector<1x8x128xf32> to vector<8x128xf32>
    %27 = vector.shape_cast %24 : vector<8x128xf32> to vector<1x8x128xf32>
    tpu.vector_store %arg4[%c0_12, %c0_13, %c0_14], %27 {strides = array<i32>} : memref<1x8x128xf32, #tpu.memory_space<vmem>>, vector<1x8x128xf32>,
    return
  }
  func.func @transform_0(%arg0: i32, %arg1: i32) -> (i32, i32) {
    %c1_i32 = arith.constant 1 : i32
    %0 = arith.muli %arg0, %c1_i32 : i32
    %1 = arith.addi %0, %arg1 : i32
    %c0_i32 = arith.constant 0 : i32
    %2 = arith.minsi %1, %c0_i32 : i32
    %c0_i32_0 = arith.constant 0 : i32
    %c0_i32_1 = arith.constant 0 : i32
    return %2, %c0_i32_0 : i32, i32
  }
  func.func @transform_1(%arg0: i32, %arg1: i32) -> (i32, i32) {
    %c1_i32 = arith.constant 1 : i32
    %0 = arith.muli %arg0, %c1_i32 : i32
    %1 = arith.addi %0, %arg1 : i32
    %c0_i32 = arith.constant 0 : i32
    %2 = arith.minsi %1, %c0_i32 : i32
    %c0_i32_0 = arith.constant 0 : i32
    %c0_i32_1 = arith.constant 0 : i32
    return %2, %c0_i32_0 : i32, i32
  }
  func.func @transform_2(%arg0: i32, %arg1: i32) -> (i32, i32, i32) {
    %c0_i32 = arith.constant 0 : i32
    %c0_i32_0 = arith.constant 0 : i32
    %c0_i32_1 = arith.constant 0 : i32
    return %arg0, %c0_i32, %c0_i32_0 : i32, i32, i32
  }
}

</mosaic_0001>

<llo_original>
// kernel: tpu_custom_call.1
$region0: #{tpu_custom_call.1}
  #allocation0 [shape = 'u32[]', space=smem, size = 0x4, offset = 0x4, fixed_abs, tag = 'smem constant byte address 0x4 - core index']
  #allocation1 [shape = 'u32[144,128]{1,0:T(1,128)}', space=vmem, size = 0x12000, scoped, tag = 'internal scratch']
  %s0 = inlined_call_operand.hbm [shape: f32[16,128], index: 0, kind: input, shape index: {}]
  %s1 = inlined_call_operand.hbm [shape: f32[16,128], index: 1, kind: input, shape index: {}]
  %s2 = inlined_call_operand.hbm [shape: f32[1,8,128], index: 2, kind: output, shape index: {}]
  %s3 = sld [smem:[#allocation0]]
  $region30: #{tpu_custom_call.1} parent=0
    _
  %s5 = ssub.s32 1, %s3
  %s6 = scalar_select 0, %s5, %s3
  $region1: #{tpu_custom_call.1} parent=0
    #allocation2 [shape = 'u8[8192]{0}', space=vmem, size = 0x2000, scoped, tag = 'input window, operand 0, single buffered']
    #allocation3 [shape = 's32[1]{0}', space=sflag, size = 0x4, scoped, tag = 'scoped memory for tpu_custom_call.1']
    #allocation4 [shape = 's32[1]{0}', space=sflag, size = 0x4, scoped, tag = 'scoped memory for tpu_custom_call.1']
    #allocation5 [shape = 'u8[8192]{0}', space=vmem, size = 0x2000, scoped, tag = 'input window, operand 1, single buffered']
    #allocation6 [shape = 's32[1]{0}', space=sflag, size = 0x4, scoped, tag = 'scoped memory for tpu_custom_call.1']
    #allocation7 [shape = 'u8[4096]{0}', space=vmem, size = 0x1000, scoped, tag = 'output window, operand 0, single buffered']
    %7 = vsyncpa [#allocation3], 0
    %8 = vsyncpa [#allocation6], 0
    %9 = vsyncpa [#allocation4], 0
    // Predicated region
    $region2: #{tpu_custom_call.1} parent=1 // pred_check
      _
    $region3: #{tpu_custom_call.1} parent=1 // pred_check_branch
      %11 = sbr.rel (0) target = $region5
    $region4: #{tpu_custom_call.1} parent=1 // pred_region
      %s12 = sadd.s32 0, 0
      %p13 = scmp.lt.s32.totalorder %s12, 0
      %s14 = scalar_select %p13, %s12, 0
      %s15 = smul.u32 2, %s14
      %s17 = ssub.s32 256, 256
      %18 = vsyncadd [#allocation3], %s17
      %s19 = smul.addr %s15, 128
      %s20 = scalar_lea.hbm %s0, %s19
      %s21 = sshll.u32 [#allocation2], 4
      %s22 = int_to_ptr.vmem [resolvable:$true] %s21
      %27 = dma.hbm_to_vmem [thread:$0]  %s20, 256, %s22, [#allocation3], 128, 128, 8
    $region5: #{tpu_custom_call.1} parent=1 // pred_fallthru
      _
    // Predicated region
    $region6: #{tpu_custom_call.1} parent=1 // pred_check
      _
    $region7: #{tpu_custom_call.1} parent=1 // pred_check_branch
      %29 = sbr.rel (0) target = $region9
    $region8: #{tpu_custom_call.1} parent=1 // pred_region
      %s30 = sadd.s32 0, 0
      %p31 = scmp.lt.s32.totalorder %s30, 0
      %s32 = scalar_select %p31, %s30, 0
      %s33 = smul.u32 2, %s32
      %s35 = ssub.s32 256, 256
      %36 = vsyncadd [#allocation6], %s35
      %s37 = smul.addr %s33, 128
      %s38 = scalar_lea.hbm %s1, %s37
      %s39 = sshll.u32 [#allocation5], 4
      %s40 = int_to_ptr.vmem [resolvable:$true] %s39
      %45 = dma.hbm_to_vmem [thread:$0]  %s38, 256, %s40, [#allocation6], 128, 128, 8
    $region9: #{tpu_custom_call.1} parent=1 // pred_fallthru
      _
    // Predicated region
    $region10: #{tpu_custom_call.1} parent=1 // pred_check
      _
    $region11: #{tpu_custom_call.1} parent=1 // pred_check_branch
      %47 = sbr.rel (0) target = $region13
    $region12: #{tpu_custom_call.1} parent=1 // pred_region
      %48 = dma.done [#allocation3], 256
    $region13: #{tpu_custom_call.1} parent=1 // pred_fallthru
      _
    // Predicated region
    $region14: #{tpu_custom_call.1} parent=1 // pred_check
      _
    $region15: #{tpu_custom_call.1} parent=1 // pred_check_branch
      %50 = sbr.rel (0) target = $region17
    $region16: #{tpu_custom_call.1} parent=1 // pred_region
      %51 = dma.done [#allocation6], 256
    $region17: #{tpu_custom_call.1} parent=1 // pred_fallthru
      _
    %s52 = sadd.s32 0, 0
    %p53 = scmp.lt.s32.totalorder %s52, 0
    %s54 = scalar_select %p53, %s52, 0
    %s55 = smul.u32 2, %s54
    %s56 = sadd.s32 0, 0
    %p57 = scmp.lt.s32.totalorder %s56, 0
    %s58 = scalar_select %p57, %s56, 0
    %s59 = smul.u32 2, %s58
    %p60 = scmp.eq.s32.totalorder 0, 0
    // Predicated region
    $region18: #{tpu_custom_call.1} parent=1 // pred_check
      %p61 = pneg %p60
    $region19: #{tpu_custom_call.1} parent=1 // pred_check_branch
      %63 = sbr.rel (%p61) target = $region21
    $region20: #{tpu_custom_call.1} parent=1 // pred_region
      %64 = vst [vmem:[#allocation7] sm:$0xff] 0.0
    $region21: #{tpu_custom_call.1} parent=1 // pred_fallthru
      _
    %v65 = vld [vmem:[#allocation2] sm:$0xff]
    %v66 = vld [vmem:[#allocation2 + $0x8] sm:$0xff]
    %v67 = vld [vmem:[#allocation5] sm:$0xff]
    %v68 = vld [vmem:[#allocation5 + $0x8] sm:$0xff]
    %v69 = vlog2.pop %v65
    %v70 = vmul.f32 %v69, 0.6931472
    %v71 = vlog2.pop %v66
    %v72 = vmul.f32 %v71, 0.6931472
    %v73 = vmax.f32 %v70, -100.0
    %v74 = vmax.f32 %v72, -100.0
    %v75 = vsub.f32 1.0, %v65
    %v76 = vsub.f32 1.0, %v66
    %v77 = vlog2.pop %v75
    %v78 = vmul.f32 %v77, 0.6931472
    %v79 = vlog2.pop %v76
    %v80 = vmul.f32 %v79, 0.6931472
    %v81 = vmax.f32 %v78, -100.0
    %v82 = vmax.f32 %v80, -100.0
    %v83 = vmul.f32 %v67, %v73
    %v84 = vmul.f32 %v68, %v74
    %v85 = vsub.f32 1.0, %v67
    %v86 = vsub.f32 1.0, %v68
    %v87 = vmul.f32 %v85, %v81
    %v88 = vmul.f32 %v86, %v82
    %v89 = vadd.f32 %v83, %v87
    %v90 = vadd.f32 %v84, %v88
    %v91 = vsub.f32 0.0, %v89
    %v92 = vsub.f32 0.0, %v90
    %v93 = vadd.f32 %v91, %v92
    %v94 = vld [vmem:[#allocation7] sm:$0xff]
    %v95 = vadd.f32 %v94, %v93
    %96 = vst [vmem:[#allocation7] sm:$0xff] %v95
    // Predicated region
    $region22: #{tpu_custom_call.1} parent=1 // pred_check
      _
    $region23: #{tpu_custom_call.1} parent=1 // pred_check_branch
      %98 = sbr.rel (0) target = $region25
    $region24: #{tpu_custom_call.1} parent=1 // pred_region
      %s100 = ssub.s32 128, 128
      %101 = vsyncadd [#allocation4], %s100
      %s103 = sshll.u32 [#allocation7], 4
      %s104 = int_to_ptr.vmem [resolvable:$true] %s103
      %106 = dma.vmem_to_hbm [thread:$0]  %s104, 128, %s2, [#allocation4]
    $region25: #{tpu_custom_call.1} parent=1 // pred_fallthru
      _
    // Predicated region
    $region26: #{tpu_custom_call.1} parent=1 // pred_check
      _
    $region27: #{tpu_custom_call.1} parent=1 // pred_check_branch
      %108 = sbr.rel (0) target = $region29
    $region28: #{tpu_custom_call.1} parent=1 // pred_region
      %109 = dma.done [#allocation4], 128
    $region29: #{tpu_custom_call.1} parent=1 // pred_fallthru
      _
    %110 = vsyncpa [#allocation3], 1
    %111 = vsyncpa [#allocation6], 1
    %112 = vsyncpa [#allocation4], 1

</llo_original>
